<compile_context>
chip_gen: v7x
topology: tpu7x:2x2x1
jax: 0.10.0
libtpu: 0.0.40
codegen_flags: <defaults>
</compile_context>

<pallas_src>
import numpy as np
import jax
import jax.numpy as jnp
from jax.experimental import pallas as pl
from jax.experimental.pallas import tpu as pltpu

_EPS = 1e-5
_LANE = 128


def _round_up(x, m):
    return ((x + m - 1) // m) * m


# ----------------------------- Pallas kernel --------------------------------
def qnet_kernel(x_ref, m1_ref, m2_ref, w2h_ref, w2p_ref, w3_ref, vec_ref,
                out_ref):
    l1 = m1_ref.shape[1]          # hidden1 // 2
    l2 = m2_ref.shape[1]          # hidden1 // 4
    h2 = w3_ref.shape[0]          # hidden2

    vec = vec_ref[...]            # (8, 128) packed slab of small vectors
    x = x_ref[...]                # (TB, 128) packed [laser | pos | zeros]

    def layernorm(t, g, b):
        mu = jnp.mean(t, axis=-1, keepdims=True)
        var = jnp.mean((t - mu) ** 2, axis=-1, keepdims=True)
        return (t - mu) * jax.lax.rsqrt(var + _EPS) * g + b

    # conv1 as matmul; m1 is padded to 128 input rows so the pos / pad lanes
    # of x hit zero rows.  The scalar conv bias cancels under the LN below.
    h = jnp.dot(x, m1_ref[...], preferred_element_type=jnp.float32)
    h = jnp.maximum(layernorm(h, vec[0:1, :l1], vec[1:2, :l1]), 0.0)

    # conv2 as matmul (scalar bias likewise cancelled by LN)
    h = jnp.dot(h, m2_ref[...], preferred_element_type=jnp.float32)
    h = jnp.maximum(layernorm(h, vec[2:3, :l2], vec[3:4, :l2]), 0.0)

    # fc2 over cat([h, pos], 1): h-part dot + pos-part dot against the packed
    # input (w2p is zero everywhere except the pos lanes) -> no lane slicing.
    z = (jnp.dot(h, w2h_ref[...], preferred_element_type=jnp.float32)
         + jnp.dot(x, w2p_ref[...], preferred_element_type=jnp.float32)
         + vec[4:5, :h2])
    z = jnp.maximum(layernorm(z, vec[5:6, :h2], vec[6:7, :h2]), 0.0)

    # fc3: lane-dense (h2, 128) weight; bias row is already 128-wide
    # (zeros past nb_actions), so the extra output lanes are exactly zero.
    out_ref[...] = (jnp.dot(z, w3_ref[...], preferred_element_type=jnp.float32)
                    + vec[7:8, :]).astype(out_ref.dtype)


# ------------------------------ wrapper --------------------------------------
def qnetwork_forward(pos, laser, params, *, block_b=1024):
    b, nb_pos = pos.shape
    nb_laser = laser.shape[1]
    nb_actions = params["w3"].shape[1]
    assert nb_laser + nb_pos <= _LANE

    # Pack [laser | pos | zeros] into one lane-dense (b, 128) operand.
    # (Ideally this layout is produced upstream where the data is generated.)
    pad_w = _LANE - nb_laser - nb_pos
    x = jnp.concatenate(
        [laser, pos, jnp.zeros((b, pad_w), laser.dtype)], axis=1)

    # Batch tile: >= 8 sublanes, capped at block_b.
    tb = min(block_b, _round_up(b, 8))
    b_pad = _round_up(b, tb)
    # v7x has 2 TensorCores: if the grid would have a single step, halve the
    # tile so the "parallel" axis can shard across both cores.
    if b_pad == tb and tb >= 16:
        tb = _round_up((tb + 1) // 2, 8)
        b_pad = _round_up(b, tb)
    if b_pad != b:
        x = jnp.pad(x, ((0, b_pad - b), (0, 0)))

    batched = lambda i: (i, 0)    # per-step activation tiles
    resident = lambda i: (0, 0)   # weights stay VMEM-resident across the grid

    cp_kwargs = dict(dimension_semantics=("parallel",))
    if tb >= 4096:
        # v5e's default scoped VMEM is 16 MiB; raise it for very large tiles
        # (stays within every generation's physical VMEM, v7x's 64 MiB incl.).
        cp_kwargs["vmem_limit_bytes"] = 64 * 1024 * 1024

    out = pl.pallas_call(
        qnet_kernel,
        out_shape=jax.ShapeDtypeStruct((b_pad, _LANE), jnp.float32),
        grid=(b_pad // tb,),
        in_specs=[
            pl.BlockSpec((tb, _LANE), batched),
            pl.BlockSpec(params["m1p"].shape, resident),
            pl.BlockSpec(params["m2"].shape, resident),
            pl.BlockSpec(params["w2h"].shape, resident),
            pl.BlockSpec(params["w2p"].shape, resident),
            pl.BlockSpec(params["w3p"].shape, resident),
            pl.BlockSpec(params["vec"].shape, resident),
        ],
        out_specs=pl.BlockSpec((tb, _LANE), batched),
        compiler_params=pltpu.CompilerParams(**cp_kwargs),
    )(x, params["m1p"], params["m2"], params["w2h"], params["w2p"],
      params["w3p"], params["vec"])
    return out[:b, :nb_actions]


# ------------------------------ glue / setup ---------------------------------
def conv1d_as_matrix(w_taps, length, stride=2, pad=2):
    """Build (length, lout) matrix M such that x @ M == conv1d(x, w_taps)."""
    w = np.asarray(jax.device_get(w_taps), np.float32)
    k = w.shape[0]
    lout = (length + 2 * pad - k) // stride + 1
    m = np.zeros((length, lout), np.float32)
    for j in range(lout):
        for t in range(k):
            i = stride * j + t - pad
            if 0 <= i < length:
                m[i, j] = w[t]
    return m


def init_params(key, nb_pos, nb_laser, nb_actions, hidden1=64, hidden2=64,
                init_w=0.003):
    assert nb_laser == hidden1, "forward() implicitly requires nb_laser == hidden1"
    l1, l2 = hidden1 // 2, hidden1 // 4
    assert nb_laser + nb_pos <= _LANE, "packed input assumes laser+pos fit 128 lanes"
    assert max(l1, l2, hidden2, nb_actions, nb_pos) <= _LANE, \
        "packed-vector slab assumes every small vector fits one 128-lane row"

    ks = jax.random.split(key, 8)
    u = lambda k, shape, v: jax.random.uniform(k, shape, jnp.float32, -v, v)

    # fanin_init: v = 1/sqrt(size[0])  (conv weights have size[0] == 1)
    conv1_w = u(ks[0], (5,), 1.0)
    conv1_b = u(ks[1], (), 1.0)          # used by the reference only
    conv2_w = u(ks[2], (5,), 1.0)
    conv2_b = u(ks[3], (), 1.0)          # used by the reference only
    fc2_in = l2 + nb_pos
    fc2_w = u(ks[4], (hidden2, fc2_in), 1.0 / np.sqrt(hidden2))
    fc2_b = u(ks[5], (hidden2,), 1.0 / np.sqrt(fc2_in))
    fc3_w = u(ks[6], (nb_actions, hidden2), init_w)
    fc3_b = u(ks[7], (nb_actions,), 1.0 / np.sqrt(hidden2))

    m1 = conv1d_as_matrix(conv1_w, nb_laser)                 # (nb_laser, l1)
    m2 = conv1d_as_matrix(conv2_w, l1)                       # (l1, l2)
    w2 = np.asarray(jax.device_get(fc2_w)).T.copy()          # (l2+nb_pos, h2)
    w3 = np.asarray(jax.device_get(fc3_w)).T.copy()          # (h2, nb_actions)

    # conv1 matrix padded to 128 input rows (pos / pad lanes -> zero rows)
    m1p = np.zeros((_LANE, l1), np.float32)
    m1p[:nb_laser, :] = m1
    # fc2 split: h-part (l2, h2) + pos-part embedded at the pos lanes of (128, h2)
    w2h = w2[:l2, :].copy()
    w2p = np.zeros((_LANE, hidden2), np.float32)
    w2p[nb_laser:nb_laser + nb_pos, :] = w2[l2:, :]
    # fc3 padded to 128 output lanes (lane-dense store)
    w3p = np.zeros((hidden2, _LANE), np.float32)
    w3p[:, :nb_actions] = w3

    # One (8, 128) slab for every small per-feature vector:
    #   row 0/1: LN1_1 gamma/beta    row 2/3: LN1_2 gamma/beta
    #   row 4:   fc2 bias            row 5/6: LN2 gamma/beta
    #   row 7:   fc3 bias (zeros past nb_actions)
    vec = np.zeros((8, _LANE), np.float32)
    vec[0, :l1] = 1.0
    vec[2, :l2] = 1.0
    vec[4, :hidden2] = np.asarray(jax.device_get(fc2_b))
    vec[5, :hidden2] = 1.0
    vec[7, :nb_actions] = np.asarray(jax.device_get(fc3_b))

    return dict(
        # kernel operands
        m1p=jnp.asarray(m1p), m2=jnp.asarray(m2),
        w2h=jnp.asarray(w2h), w2p=jnp.asarray(w2p),
        w3p=jnp.asarray(w3p), vec=jnp.asarray(vec),
        # reference-only (unpadded) params
        m1=jnp.asarray(m1), w2=jnp.asarray(w2), w3=jnp.asarray(w3),
        conv1_b=conv1_b, conv2_b=conv2_b,
    )


# ------------------------------- reference -----------------------------------
def qnetwork_ref(pos, laser, params):
    def ln(x, g, b):
        mu = jnp.mean(x, axis=-1, keepdims=True)
        var = jnp.mean((x - mu) ** 2, axis=-1, keepdims=True)
        return (x - mu) / jnp.sqrt(var + _EPS) * g + b

    v = params["vec"]
    l1 = params["m1"].shape[1]
    l2 = params["m2"].shape[1]
    h2, na = params["w3"].shape

    h = laser @ params["m1"] + params["conv1_b"]
    h = jax.nn.relu(ln(h, v[0, :l1], v[1, :l1]))
    h = h @ params["m2"] + params["conv2_b"]
    h = jax.nn.relu(ln(h, v[2, :l2], v[3, :l2]))
    z = jnp.concatenate([h, pos], axis=1) @ params["w2"] + v[4, :h2]
    z = jax.nn.relu(ln(z, v[5, :h2], v[6, :h2]))
    return z @ params["w3"] + v[7, :na]


# --------------------------------- main ---------------------------------------
if __name__ == "__main__":
    NB_POS, NB_LASER, NB_ACTIONS = 4, 64, 5
    HIDDEN1, HIDDEN2 = 64, 64      # forward() requires nb_laser == hidden1

    key = jax.random.PRNGKey(0)
    kp, kl, kw = jax.random.split(key, 3)
    params = init_params(kw, NB_POS, NB_LASER, NB_ACTIONS, HIDDEN1, HIDDEN2)

    # small batch (single grid step)
    B = 2
    pos = jax.random.normal(kp, (B, NB_POS), jnp.float32)
    laser = jax.random.normal(kl, (B, NB_LASER), jnp.float32)
    out = jax.block_until_ready(qnetwork_forward(pos, laser, params))
    ref = qnetwork_ref(pos, laser, params)
    assert out.shape == (B, NB_ACTIONS)
    np.testing.assert_allclose(np.asarray(out), np.asarray(ref),
                               rtol=1e-4, atol=1e-4)

    # larger batch exercising padding + the >=2-step (two-TensorCore) grid path
    B2 = 40
    pos2 = jax.random.normal(kp, (B2, NB_POS), jnp.float32)
    laser2 = jax.random.normal(kl, (B2, NB_LASER), jnp.float32)
    out2 = jax.block_until_ready(qnetwork_forward(pos2, laser2, params))
    ref2 = qnetwork_ref(pos2, laser2, params)
    assert out2.shape == (B2, NB_ACTIONS)
    np.testing.assert_allclose(np.asarray(out2), np.asarray(ref2),
                               rtol=1e-4, atol=1e-4)

    print("KERNEL_OK")
</pallas_src>

<mosaic_0001>
module attributes {stable_mosaic.version = 11 : i64} {
  func.func @qnet_kernel(%arg0: i32, %arg1: memref<8x128xf32, #tpu.memory_space<vmem>>, %arg2: memref<128x32xf32, #tpu.memory_space<vmem>>, %arg3: memref<32x16xf32, #tpu.memory_space<vmem>>, %arg4: memref<16x64xf32, #tpu.memory_space<vmem>>, %arg5: memref<128x64xf32, #tpu.memory_space<vmem>>, %arg6: memref<64x128xf32, #tpu.memory_space<vmem>>, %arg7: memref<8x128xf32, #tpu.memory_space<vmem>>, %arg8: memref<8x128xf32, #tpu.memory_space<vmem>>) attributes {dimension_semantics = [#tpu.dimension_semantics<parallel>], iteration_bounds = array<i64: 1>, scalar_prefetch = 0 : i64, scratch_operands = 0 : i64, tpu.core_type = #tpu.core_type<tc>, window_params = [{transform_indices = @transform_0, window_bounds = array<i64: 8, 128>}, {pipeline_mode = #tpu.pipeline_mode<synchronous>, transform_indices = @transform_1, window_bounds = array<i64: 128, 32>}, {pipeline_mode = #tpu.pipeline_mode<synchronous>, transform_indices = @transform_2, window_bounds = array<i64: 32, 16>}, {pipeline_mode = #tpu.pipeline_mode<synchronous>, transform_indices = @transform_3, window_bounds = array<i64: 16, 64>}, {pipeline_mode = #tpu.pipeline_mode<synchronous>, transform_indices = @transform_4, window_bounds = array<i64: 128, 64>}, {pipeline_mode = #tpu.pipeline_mode<synchronous>, transform_indices = @transform_5, window_bounds = array<i64: 64, 128>}, {pipeline_mode = #tpu.pipeline_mode<synchronous>, transform_indices = @transform_6, window_bounds = array<i64: 8, 128>}, {transform_indices = @transform_7, window_bounds = array<i64: 8, 128>}]} {
    %c0 = arith.constant 0 : index
    %c0_0 = arith.constant 0 : index
    %0 = vector.load %arg7[%c0, %c0_0] : memref<8x128xf32, #tpu.memory_space<vmem>>, vector<8x128xf32>
    %c0_1 = arith.constant 0 : index
    %c0_2 = arith.constant 0 : index
    %1 = vector.load %arg1[%c0_1, %c0_2] : memref<8x128xf32, #tpu.memory_space<vmem>>, vector<8x128xf32>
    %c0_3 = arith.constant 0 : index
    %c0_4 = arith.constant 0 : index
    %2 = vector.load %arg2[%c0_3, %c0_4] : memref<128x32xf32, #tpu.memory_space<vmem>>, vector<128x32xf32>
    %cst = arith.constant dense<0.000000e+00> : vector<8x32xf32>
    %3 = tpu.matmul %1, %2, %cst {dimension_numbers = #tpu.dot_dimension_numbers<[1], [0], [0], [1], [0, 0, 1, 1], [], []>} : vector<8x128xf32>, vector<128x32xf32>, vector<8x32xf32> -> vector<8x32xf32>
    %4 = vector.extract_strided_slice %0 {offsets = [0, 0], sizes = [1, 32], strides = [1, 1]} : vector<8x128xf32> to vector<1x32xf32>
    %5 = vector.extract_strided_slice %0 {offsets = [1, 0], sizes = [1, 32], strides = [1, 1]} : vector<8x128xf32> to vector<1x32xf32>
    %cst_5 = arith.constant dense<0.000000e+00> : vector<8xf32>
    %6 = vector.multi_reduction <add>, %3, %cst_5 [1] : vector<8x32xf32> to vector<8xf32>
    %7 = vector.shape_cast %6 : vector<8xf32> to vector<8x1xf32>
    %cst_6 = arith.constant 3.200000e+01 : f32
    %8 = vector.broadcast %cst_6 : f32 to vector<8x1xf32>
    %9 = arith.divf %7, %8 : vector<8x1xf32>
    %10 = vector.broadcast %9 : vector<8x1xf32> to vector<8x32xf32>
    %11 = arith.subf %3, %10 : vector<8x32xf32>
    %12 = arith.mulf %11, %11 : vector<8x32xf32>
    %cst_7 = arith.constant dense<0.000000e+00> : vector<8xf32>
    %13 = vector.multi_reduction <add>, %12, %cst_7 [1] : vector<8x32xf32> to vector<8xf32>
    %14 = vector.shape_cast %13 : vector<8xf32> to vector<8x1xf32>
    %cst_8 = arith.constant 3.200000e+01 : f32
    %15 = vector.broadcast %cst_8 : f32 to vector<8x1xf32>
    %16 = arith.divf %14, %15 : vector<8x1xf32>
    %17 = vector.broadcast %9 : vector<8x1xf32> to vector<8x32xf32>
    %18 = arith.subf %3, %17 : vector<8x32xf32>
    %cst_9 = arith.constant 9.99999974E-6 : f32
    %19 = vector.broadcast %cst_9 : f32 to vector<8x1xf32>
    %20 = arith.addf %16, %19 : vector<8x1xf32>
    %21 = math.rsqrt %20 : vector<8x1xf32>
    %22 = vector.broadcast %21 : vector<8x1xf32> to vector<8x32xf32>
    %23 = arith.mulf %18, %22 : vector<8x32xf32>
    %24 = vector.broadcast %4 : vector<1x32xf32> to vector<8x32xf32>
    %25 = arith.mulf %23, %24 : vector<8x32xf32>
    %26 = vector.broadcast %5 : vector<1x32xf32> to vector<8x32xf32>
    %27 = arith.addf %25, %26 : vector<8x32xf32>
    %cst_10 = arith.constant 0.000000e+00 : f32
    %28 = vector.broadcast %cst_10 : f32 to vector<8x32xf32>
    %29 = arith.maximumf %27, %28 : vector<8x32xf32>
    %c0_11 = arith.constant 0 : index
    %c0_12 = arith.constant 0 : index
    %30 = vector.load %arg3[%c0_11, %c0_12] : memref<32x16xf32, #tpu.memory_space<vmem>>, vector<32x16xf32>
    %cst_13 = arith.constant dense<0.000000e+00> : vector<8x16xf32>
    %31 = tpu.matmul %29, %30, %cst_13 {dimension_numbers = #tpu.dot_dimension_numbers<[1], [0], [0], [1], [0, 0, 1, 1], [], []>} : vector<8x32xf32>, vector<32x16xf32>, vector<8x16xf32> -> vector<8x16xf32>
    %32 = vector.extract_strided_slice %0 {offsets = [2, 0], sizes = [1, 16], strides = [1, 1]} : vector<8x128xf32> to vector<1x16xf32>
    %33 = vector.extract_strided_slice %0 {offsets = [3, 0], sizes = [1, 16], strides = [1, 1]} : vector<8x128xf32> to vector<1x16xf32>
    %cst_14 = arith.constant dense<0.000000e+00> : vector<8xf32>
    %34 = vector.multi_reduction <add>, %31, %cst_14 [1] : vector<8x16xf32> to vector<8xf32>
    %35 = vector.shape_cast %34 : vector<8xf32> to vector<8x1xf32>
    %cst_15 = arith.constant 1.600000e+01 : f32
    %36 = vector.broadcast %cst_15 : f32 to vector<8x1xf32>
    %37 = arith.divf %35, %36 : vector<8x1xf32>
    %38 = vector.broadcast %37 : vector<8x1xf32> to vector<8x16xf32>
    %39 = arith.subf %31, %38 : vector<8x16xf32>
    %40 = arith.mulf %39, %39 : vector<8x16xf32>
    %cst_16 = arith.constant dense<0.000000e+00> : vector<8xf32>
    %41 = vector.multi_reduction <add>, %40, %cst_16 [1] : vector<8x16xf32> to vector<8xf32>
    %42 = vector.shape_cast %41 : vector<8xf32> to vector<8x1xf32>
    %cst_17 = arith.constant 1.600000e+01 : f32
    %43 = vector.broadcast %cst_17 : f32 to vector<8x1xf32>
    %44 = arith.divf %42, %43 : vector<8x1xf32>
    %45 = vector.broadcast %37 : vector<8x1xf32> to vector<8x16xf32>
    %46 = arith.subf %31, %45 : vector<8x16xf32>
    %cst_18 = arith.constant 9.99999974E-6 : f32
    %47 = vector.broadcast %cst_18 : f32 to vector<8x1xf32>
    %48 = arith.addf %44, %47 : vector<8x1xf32>
    %49 = math.rsqrt %48 : vector<8x1xf32>
    %50 = vector.broadcast %49 : vector<8x1xf32> to vector<8x16xf32>
    %51 = arith.mulf %46, %50 : vector<8x16xf32>
    %52 = vector.broadcast %32 : vector<1x16xf32> to vector<8x16xf32>
    %53 = arith.mulf %51, %52 : vector<8x16xf32>
    %54 = vector.broadcast %33 : vector<1x16xf32> to vector<8x16xf32>
    %55 = arith.addf %53, %54 : vector<8x16xf32>
    %cst_19 = arith.constant 0.000000e+00 : f32
    %56 = vector.broadcast %cst_19 : f32 to vector<8x16xf32>
    %57 = arith.maximumf %55, %56 : vector<8x16xf32>
    %c0_20 = arith.constant 0 : index
    %c0_21 = arith.constant 0 : index
    %58 = vector.load %arg4[%c0_20, %c0_21] : memref<16x64xf32, #tpu.memory_space<vmem>>, vector<16x64xf32>
    %cst_22 = arith.constant dense<0.000000e+00> : vector<8x64xf32>
    %59 = tpu.matmul %57, %58, %cst_22 {dimension_numbers = #tpu.dot_dimension_numbers<[1], [0], [0], [1], [0, 0, 1, 1], [], []>} : vector<8x16xf32>, vector<16x64xf32>, vector<8x64xf32> -> vector<8x64xf32>
    %c0_23 = arith.constant 0 : index
    %c0_24 = arith.constant 0 : index
    %60 = vector.load %arg5[%c0_23, %c0_24] : memref<128x64xf32, #tpu.memory_space<vmem>>, vector<128x64xf32>
    %cst_25 = arith.constant dense<0.000000e+00> : vector<8x64xf32>
    %61 = tpu.matmul %1, %60, %cst_25 {dimension_numbers = #tpu.dot_dimension_numbers<[1], [0], [0], [1], [0, 0, 1, 1], [], []>} : vector<8x128xf32>, vector<128x64xf32>, vector<8x64xf32> -> vector<8x64xf32>
    %62 = arith.addf %59, %61 : vector<8x64xf32>
    %63 = vector.extract_strided_slice %0 {offsets = [4, 0], sizes = [1, 64], strides = [1, 1]} : vector<8x128xf32> to vector<1x64xf32>
    %64 = vector.broadcast %63 : vector<1x64xf32> to vector<8x64xf32>
    %65 = arith.addf %62, %64 : vector<8x64xf32>
    %66 = vector.extract_strided_slice %0 {offsets = [5, 0], sizes = [1, 64], strides = [1, 1]} : vector<8x128xf32> to vector<1x64xf32>
    %67 = vector.extract_strided_slice %0 {offsets = [6, 0], sizes = [1, 64], strides = [1, 1]} : vector<8x128xf32> to vector<1x64xf32>
    %cst_26 = arith.constant dense<0.000000e+00> : vector<8xf32>
    %68 = vector.multi_reduction <add>, %65, %cst_26 [1] : vector<8x64xf32> to vector<8xf32>
    %69 = vector.shape_cast %68 : vector<8xf32> to vector<8x1xf32>
    %cst_27 = arith.constant 6.400000e+01 : f32
    %70 = vector.broadcast %cst_27 : f32 to vector<8x1xf32>
    %71 = arith.divf %69, %70 : vector<8x1xf32>
    %72 = vector.broadcast %71 : vector<8x1xf32> to vector<8x64xf32>
    %73 = arith.subf %65, %72 : vector<8x64xf32>
    %74 = arith.mulf %73, %73 : vector<8x64xf32>
    %cst_28 = arith.constant dense<0.000000e+00> : vector<8xf32>
    %75 = vector.multi_reduction <add>, %74, %cst_28 [1] : vector<8x64xf32> to vector<8xf32>
    %76 = vector.shape_cast %75 : vector<8xf32> to vector<8x1xf32>
    %cst_29 = arith.constant 6.400000e+01 : f32
    %77 = vector.broadcast %cst_29 : f32 to vector<8x1xf32>
    %78 = arith.divf %76, %77 : vector<8x1xf32>
    %79 = vector.broadcast %71 : vector<8x1xf32> to vector<8x64xf32>
    %80 = arith.subf %65, %79 : vector<8x64xf32>
    %cst_30 = arith.constant 9.99999974E-6 : f32
    %81 = vector.broadcast %cst_30 : f32 to vector<8x1xf32>
    %82 = arith.addf %78, %81 : vector<8x1xf32>
    %83 = math.rsqrt %82 : vector<8x1xf32>
    %84 = vector.broadcast %83 : vector<8x1xf32> to vector<8x64xf32>
    %85 = arith.mulf %80, %84 : vector<8x64xf32>
    %86 = vector.broadcast %66 : vector<1x64xf32> to vector<8x64xf32>
    %87 = arith.mulf %85, %86 : vector<8x64xf32>
    %88 = vector.broadcast %67 : vector<1x64xf32> to vector<8x64xf32>
    %89 = arith.addf %87, %88 : vector<8x64xf32>
    %cst_31 = arith.constant 0.000000e+00 : f32
    %90 = vector.broadcast %cst_31 : f32 to vector<8x64xf32>
    %91 = arith.maximumf %89, %90 : vector<8x64xf32>
    %c0_32 = arith.constant 0 : index
    %c0_33 = arith.constant 0 : index
    %92 = vector.load %arg6[%c0_32, %c0_33] : memref<64x128xf32, #tpu.memory_space<vmem>>, vector<64x128xf32>
    %cst_34 = arith.constant dense<0.000000e+00> : vector<8x128xf32>
    %93 = tpu.matmul %91, %92, %cst_34 {dimension_numbers = #tpu.dot_dimension_numbers<[1], [0], [0], [1], [0, 0, 1, 1], [], []>} : vector<8x64xf32>, vector<64x128xf32>, vector<8x128xf32> -> vector<8x128xf32>
    %94 = vector.extract_strided_slice %0 {offsets = [7, 0], sizes = [1, 128], strides = [1, 1]} : vector<8x128xf32> to vector<1x128xf32>
    %95 = vector.broadcast %94 : vector<1x128xf32> to vector<8x128xf32>
    %96 = arith.addf %93, %95 : vector<8x128xf32>
    %c0_35 = arith.constant 0 : index
    %c0_36 = arith.constant 0 : index
    %97 = vector.load %arg8[%c0_35, %c0_36] : memref<8x128xf32, #tpu.memory_space<vmem>>, vector<8x128xf32>
    tpu.vector_store %arg8[%c0_35, %c0_36], %96 {strides = array<i32>} : memref<8x128xf32, #tpu.memory_space<vmem>>, vector<8x128xf32>,
    return
  }
  func.func @transform_0(%arg0: i32) -> (i32, i32) {
    %c0_i32 = arith.constant 0 : i32
    %c0_i32_0 = arith.constant 0 : i32
    return %arg0, %c0_i32 : i32, i32
  }
  func.func @transform_1(%arg0: i32) -> (i32, i32) {
    %c0_i32 = arith.constant 0 : i32
    %c0_i32_0 = arith.constant 0 : i32
    %c0_i32_1 = arith.constant 0 : i32
    return %c0_i32, %c0_i32_0 : i32, i32
  }
  func.func @transform_2(%arg0: i32) -> (i32, i32) {
    %c0_i32 = arith.constant 0 : i32
    %c0_i32_0 = arith.constant 0 : i32
    %c0_i32_1 = arith.constant 0 : i32
    return %c0_i32, %c0_i32_0 : i32, i32
  }
  func.func @transform_3(%arg0: i32) -> (i32, i32) {
    %c0_i32 = arith.constant 0 : i32
    %c0_i32_0 = arith.constant 0 : i32
    %c0_i32_1 = arith.constant 0 : i32
    return %c0_i32, %c0_i32_0 : i32, i32
  }
  func.func @transform_4(%arg0: i32) -> (i32, i32) {
    %c0_i32 = arith.constant 0 : i32
    %c0_i32_0 = arith.constant 0 : i32
    %c0_i32_1 = arith.constant 0 : i32
    return %c0_i32, %c0_i32_0 : i32, i32
  }
  func.func @transform_5(%arg0: i32) -> (i32, i32) {
    %c0_i32 = arith.constant 0 : i32
    %c0_i32_0 = arith.constant 0 : i32
    %c0_i32_1 = arith.constant 0 : i32
    return %c0_i32, %c0_i32_0 : i32, i32
  }
  func.func @transform_6(%arg0: i32) -> (i32, i32) {
    %c0_i32 = arith.constant 0 : i32
    %c0_i32_0 = arith.constant 0 : i32
    %c0_i32_1 = arith.constant 0 : i32
    return %c0_i32, %c0_i32_0 : i32, i32
  }
  func.func @transform_7(%arg0: i32) -> (i32, i32) {
    %c0_i32 = arith.constant 0 : i32
    %c0_i32_0 = arith.constant 0 : i32
    return %arg0, %c0_i32 : i32, i32
  }
}

</mosaic_0001>

<llo_original>
// kernel: tpu_custom_call.1
$region0: #{tpu_custom_call.1}
  #allocation0 [shape = 'u32[]', space=smem, size = 0x4, offset = 0x4, fixed_abs, tag = 'smem constant byte address 0x4 - core index']
  #allocation1 [shape = 'u32[144,128]{1,0:T(1,128)}', space=vmem, size = 0x12000, scoped, tag = 'internal scratch']
  %s0 = inlined_call_operand.vmem [shape: f32[8,128], index: 0, kind: input, shape index: {}]
  %s1 = inlined_call_operand.vmem [shape: f32[128,32], index: 1, kind: input, shape index: {}]
  %s2 = inlined_call_operand.vmem [shape: f32[32,16], index: 2, kind: input, shape index: {}]
  %s3 = inlined_call_operand.vmem [shape: f32[16,64], index: 3, kind: input, shape index: {}]
  %s4 = inlined_call_operand.vmem [shape: f32[128,64], index: 4, kind: input, shape index: {}]
  %s5 = inlined_call_operand.vmem [shape: f32[64,128], index: 5, kind: input, shape index: {}]
  %s6 = inlined_call_operand.vmem [shape: f32[8,128], index: 6, kind: input, shape index: {}]
  %s7 = inlined_call_operand.hbm [shape: f32[8,128], index: 7, kind: output, shape index: {}]
  %s8 = sld [smem:[#allocation0]]
  $region38: #{tpu_custom_call.1} parent=0
    _
  %s10 = ssub.s32 1, %s8
  %s11 = scalar_select 0, %s10, %s8
  $region1: #{tpu_custom_call.1} parent=0
    #allocation2 [shape = 'u8[4096]{0}', space=vmem, size = 0x1000, scoped, tag = 'output window, operand 0, single buffered']
    #allocation3 [shape = 's32[1]{0}', space=sflag, size = 0x4, scoped, tag = 'scoped memory for tpu_custom_call.1']
    %12 = vsyncpa [#allocation3], 0
    // Predicated region
    $region2: #{tpu_custom_call.1} parent=1 // pred_check
      _
    $region3: #{tpu_custom_call.1} parent=1 // pred_check_branch
      %14 = sbr.rel (0) target = $region5
    $region4: #{tpu_custom_call.1} parent=1 // pred_region
      _
    $region5: #{tpu_custom_call.1} parent=1 // pred_fallthru
      _
    // Predicated region
    $region6: #{tpu_custom_call.1} parent=1 // pred_check
      _
    $region7: #{tpu_custom_call.1} parent=1 // pred_check_branch
      %16 = sbr.rel (0) target = $region9
    $region8: #{tpu_custom_call.1} parent=1 // pred_region
      _
    $region9: #{tpu_custom_call.1} parent=1 // pred_fallthru
      _
    // Predicated region
    $region10: #{tpu_custom_call.1} parent=1 // pred_check
      _
    $region11: #{tpu_custom_call.1} parent=1 // pred_check_branch
      %18 = sbr.rel (0) target = $region13
    $region12: #{tpu_custom_call.1} parent=1 // pred_region
      _
    $region13: #{tpu_custom_call.1} parent=1 // pred_fallthru
      _
    // Predicated region
    $region14: #{tpu_custom_call.1} parent=1 // pred_check
      _
    $region15: #{tpu_custom_call.1} parent=1 // pred_check_branch
      %20 = sbr.rel (0) target = $region17
    $region16: #{tpu_custom_call.1} parent=1 // pred_region
      _
    $region17: #{tpu_custom_call.1} parent=1 // pred_fallthru
      _
    // Predicated region
    $region18: #{tpu_custom_call.1} parent=1 // pred_check
      _
    $region19: #{tpu_custom_call.1} parent=1 // pred_check_branch
      %22 = sbr.rel (0) target = $region21
    $region20: #{tpu_custom_call.1} parent=1 // pred_region
      _
    $region21: #{tpu_custom_call.1} parent=1 // pred_fallthru
      _
    // Predicated region
    $region22: #{tpu_custom_call.1} parent=1 // pred_check
      _
    $region23: #{tpu_custom_call.1} parent=1 // pred_check_branch
      %24 = sbr.rel (0) target = $region25
    $region24: #{tpu_custom_call.1} parent=1 // pred_region
      _
    $region25: #{tpu_custom_call.1} parent=1 // pred_fallthru
      _
    // Predicated region
    $region26: #{tpu_custom_call.1} parent=1 // pred_check
      _
    $region27: #{tpu_custom_call.1} parent=1 // pred_check_branch
      %26 = sbr.rel (0) target = $region29
    $region28: #{tpu_custom_call.1} parent=1 // pred_region
      _
    $region29: #{tpu_custom_call.1} parent=1 // pred_fallthru
      _
    %v27 = vld [vmem:[%s6] sm:$0xff]
    %v28 = vld [vmem:[%s0] sm:$0xff]
    %v29 = vld [vmem:[%s1] sm:$0xff]
    %v30 = vld [vmem:[%s1 + $0x8] sm:$0xff]
    %v31 = vld [vmem:[%s1 + $0x10] sm:$0xff]
    %v32 = vld [vmem:[%s1 + $0x18] sm:$0xff]
    %v33 = vld [vmem:[%s1 + $0x20] sm:$0xff]
    %v34 = vld [vmem:[%s1 + $0x28] sm:$0xff]
    %v35 = vld [vmem:[%s1 + $0x30] sm:$0xff]
    %v36 = vld [vmem:[%s1 + $0x38] sm:$0xff]
    %v37 = vld [vmem:[%s1 + $0x40] sm:$0xff]
    %v38 = vld [vmem:[%s1 + $0x48] sm:$0xff]
    %v39 = vld [vmem:[%s1 + $0x50] sm:$0xff]
    %v40 = vld [vmem:[%s1 + $0x58] sm:$0xff]
    %v41 = vld [vmem:[%s1 + $0x60] sm:$0xff]
    %v42 = vld [vmem:[%s1 + $0x68] sm:$0xff]
    %v43 = vld [vmem:[%s1 + $0x70] sm:$0xff]
    %v44 = vld [vmem:[%s1 + $0x78] sm:$0xff]
    %45 = vmatprep.subr.mxu0 0.0
    %46 = vmatpush1.msra.mxu0 %v29
    %47 = vmatprep.subr.mxu0 0.0
    %48 = vmatpush1.msra.mxu0 %v30
    %49 = vmatprep.subr.mxu0 0.0
    %50 = vmatpush1.msra.mxu0 %v31
    %51 = vmatprep.subr.mxu0 0.0
    %52 = vmatpush1.msra.mxu0 %v32
    %53 = vmatprep.subr.mxu0 0.0
    %54 = vmatpush1.msra.mxu0 %v33
    %55 = vmatprep.subr.mxu0 0.0
    %56 = vmatpush1.msra.mxu0 %v34
    %57 = vmatprep.subr.mxu0 0.0
    %58 = vmatpush1.msra.mxu0 %v35
    %59 = vmatprep.subr.mxu0 0.0
    %60 = vmatpush1.msra.mxu0 %v36
    %61 = vmatprep.subr.mxu0 0.0
    %62 = vmatpush1.msra.mxu0 %v37
    %63 = vmatprep.subr.mxu0 0.0
    %64 = vmatpush1.msra.mxu0 %v38
    %65 = vmatprep.subr.mxu0 0.0
    %66 = vmatpush1.msra.mxu0 %v39
    %67 = vmatprep.subr.mxu0 0.0
    %68 = vmatpush1.msra.mxu0 %v40
    %69 = vmatprep.subr.mxu0 0.0
    %70 = vmatpush1.msra.mxu0 %v41
    %71 = vmatprep.subr.mxu0 0.0
    %72 = vmatpush1.msra.mxu0 %v42
    %73 = vmatprep.subr.mxu0 0.0
    %74 = vmatpush1.msra.mxu0 %v43
    %75 = vmatprep.subr.mxu0 0.0
    %76 = vmatpush1.msra.mxu0 %v44
    %77 = vmatprep.subr.mxu0 0.0
    %78 = vmatpush1.msra.mxu0 0.0
    %79 = vmatprep.subr.mxu0 0.0
    %80 = vmatpush1.msra.mxu0 0.0
    %81 = vmatprep.subr.mxu0 0.0
    %82 = vmatpush1.msra.mxu0 0.0
    %83 = vmatprep.subr.mxu0 0.0
    %84 = vmatpush1.msra.mxu0 0.0
    %85 = vmatprep.subr.mxu0 0.0
    %86 = vmatpush1.msra.mxu0 0.0
    %87 = vmatprep.subr.mxu0 0.0
    %88 = vmatpush1.msra.mxu0 0.0
    %89 = vmatprep.subr.mxu0 0.0
    %90 = vmatpush1.msra.mxu0 0.0
    %91 = vmatprep.subr.mxu0 0.0
    %92 = vmatpush1.msra.mxu0 0.0
    %93 = vmatprep.subr.mxu0 0.0
    %94 = vmatpush1.msra.mxu0 0.0
    %95 = vmatprep.subr.mxu0 0.0
    %96 = vmatpush1.msra.mxu0 0.0
    %97 = vmatprep.subr.mxu0 0.0
    %98 = vmatpush1.msra.mxu0 0.0
    %99 = vmatprep.subr.mxu0 0.0
    %100 = vmatpush1.msra.mxu0 0.0
    %101 = vmatprep.subr.mxu0 0.0
    %102 = vmatpush1.msra.mxu0 0.0
    %103 = vmatprep.subr.mxu0 0.0
    %104 = vmatpush1.msra.mxu0 0.0
    %105 = vmatprep.subr.mxu0 0.0
    %106 = vmatpush1.msra.mxu0 0.0
    %107 = vmatprep.subr.mxu0 0.0
    %108 = vmatpush1.msra.mxu0 0.0
    %109 = vmatprep.mubr.f32.mxu0 0.0
    %110 = vmatmul.mubr.f32.gmra.mrb[0].mxu0 %v28
    %v111 = vpop.f32.mrb[0].mxu0
    %v112 = vadd.f32 0.0, %v111
    %v113 = vpop.f32.mrb[0].mxu0
    %114 = vdwg.mxu0
    %vm115 = vcmask 261120
    %v116 = vsel %vm115, %v112, 0.0
    %117 = vadd.xlane.f32.xlu0 %v116
    %v118 = vpop.xlane.xlu0 %117
    %v119 = vrcp.pop 32.0
    %v120 = vmul.f32 %v118, %v119
    %v121 = vsub.f32 %v112, %v120
    %v122 = vmul.f32 %v121, %v121
    %v123 = vsel %vm115, %v122, 0.0
    %124 = vadd.xlane.f32.xlu0 %v123
    %v125 = vpop.xlane.xlu0 %124
    %v126 = vmul.f32 %v125, %v119
    %v127 = vadd.f32 %v126, 1e-05
    %v128 = vrsqrt.pop %v127
    %v129 = vmul.f32 %v121, %v128
    %v130 = vlaneseq
    %v131 = vshrl.u32 %v130, 7
    %v132 = vsub.s32 0, %v131
    %v133 = vrot.slane %v27, %v132
    %v134 = vmul.f32 %v129, %v133
    %v135 = vlaneseq
    %v136 = vshrl.u32 %v135, 7
    %v137 = vsub.s32 1, %v136
    %v138 = vrot.slane %v27, %v137
    %v139 = vadd.f32 %v134, %v138
    %v140 = vmax.f32 %v139, 0.0
    %v141 = vld [vmem:[%s2] sm:$0xff]
    %v142 = vld [vmem:[%s2 + $0x8] sm:$0xff]
    %v143 = vld [vmem:[%s2 + $0x10] sm:$0xff]
    %v144 = vld [vmem:[%s2 + $0x18] sm:$0xff]
    %v146 = vsel %vm115, %v140, 0
    %148 = vmatprep.subr.mxu0 0.0
    %149 = vmatpush1.msra.mxu0 %v141
    %150 = vmatprep.subr.mxu0 0.0
    %151 = vmatpush1.msra.mxu0 %v142
    %152 = vmatprep.subr.mxu0 0.0
    %153 = vmatpush1.msra.mxu0 %v143
    %154 = vmatprep.subr.mxu0 0.0
    %155 = vmatpush1.msra.mxu0 %v144
    %156 = vmatprep.subr.mxu0 0.0
    %157 = vmatpush1.msra.mxu0 0.0
    %158 = vmatprep.subr.mxu0 0.0
    %159 = vmatpush1.msra.mxu0 0.0
    %160 = vmatprep.subr.mxu0 0.0
    %161 = vmatpush1.msra.mxu0 0.0
    %162 = vmatprep.subr.mxu0 0.0
    %163 = vmatpush1.msra.mxu0 0.0
    %164 = vmatprep.subr.mxu0 0.0
    %165 = vmatpush1.msra.mxu0 0.0
    %166 = vmatprep.subr.mxu0 0.0
    %167 = vmatpush1.msra.mxu0 0.0
    %168 = vmatprep.subr.mxu0 0.0
    %169 = vmatpush1.msra.mxu0 0.0
    %170 = vmatprep.subr.mxu0 0.0
    %171 = vmatpush1.msra.mxu0 0.0
    %172 = vmatprep.subr.mxu0 0.0
    %173 = vmatpush1.msra.mxu0 0.0
    %174 = vmatprep.subr.mxu0 0.0
    %175 = vmatpush1.msra.mxu0 0.0
    %176 = vmatprep.subr.mxu0 0.0
    %177 = vmatpush1.msra.mxu0 0.0
    %178 = vmatprep.subr.mxu0 0.0
    %179 = vmatpush1.msra.mxu0 0.0
    %180 = vmatprep.subr.mxu0 0.0
    %181 = vmatpush1.msra.mxu0 0.0
    %182 = vmatprep.subr.mxu0 0.0
    %183 = vmatpush1.msra.mxu0 0.0
    %184 = vmatprep.subr.mxu0 0.0
    %185 = vmatpush1.msra.mxu0 0.0
    %186 = vmatprep.subr.mxu0 0.0
    %187 = vmatpush1.msra.mxu0 0.0
    %188 = vmatprep.subr.mxu0 0.0
    %189 = vmatpush1.msra.mxu0 0.0
    %190 = vmatprep.subr.mxu0 0.0
    %191 = vmatpush1.msra.mxu0 0.0
    %192 = vmatprep.subr.mxu0 0.0
    %193 = vmatpush1.msra.mxu0 0.0
    %194 = vmatprep.subr.mxu0 0.0
    %195 = vmatpush1.msra.mxu0 0.0
    %196 = vmatprep.subr.mxu0 0.0
    %197 = vmatpush1.msra.mxu0 0.0
    %198 = vmatprep.subr.mxu0 0.0
    %199 = vmatpush1.msra.mxu0 0.0
    %200 = vmatprep.subr.mxu0 0.0
    %201 = vmatpush1.msra.mxu0 0.0
    %202 = vmatprep.subr.mxu0 0.0
    %203 = vmatpush1.msra.mxu0 0.0
    %204 = vmatprep.subr.mxu0 0.0
    %205 = vmatpush1.msra.mxu0 0.0
    %206 = vmatprep.subr.mxu0 0.0
    %207 = vmatpush1.msra.mxu0 0.0
    %208 = vmatprep.subr.mxu0 0.0
    %209 = vmatpush1.msra.mxu0 0.0
    %210 = vmatprep.subr.mxu0 0.0
    %211 = vmatpush1.msra.mxu0 0.0
    %212 = vmatprep.mubr.f32.mxu0 0.0
    %213 = vmatmul.mubr.f32.gmra.mrb[0].mxu0 %v146
    %v214 = vpop.f32.mrb[0].mxu0
    %v215 = vadd.f32 0.0, %v214
    %v216 = vpop.f32.mrb[0].mxu0
    %217 = vdwg.mxu0
    %vm218 = vcmask 130048
    %v219 = vsel %vm218, %v215, 0.0
    %220 = vadd.xlane.f32.xlu0 %v219
    %v221 = vpop.xlane.xlu0 %220
    %v222 = vrcp.pop 16.0
    %v223 = vmul.f32 %v221, %v222
    %v224 = vsub.f32 %v215, %v223
    %v225 = vmul.f32 %v224, %v224
    %v226 = vsel %vm218, %v225, 0.0
    %227 = vadd.xlane.f32.xlu0 %v226
    %v228 = vpop.xlane.xlu0 %227
    %v229 = vmul.f32 %v228, %v222
    %v230 = vadd.f32 %v229, 1e-05
    %v231 = vrsqrt.pop %v230
    %v232 = vmul.f32 %v224, %v231
    %v233 = vlaneseq
    %v234 = vshrl.u32 %v233, 7
    %v235 = vsub.s32 2, %v234
    %v236 = vrot.slane %v27, %v235
    %v237 = vmul.f32 %v232, %v236
    %v238 = vlaneseq
    %v239 = vshrl.u32 %v238, 7
    %v240 = vsub.s32 3, %v239
    %v241 = vrot.slane %v27, %v240
    %v242 = vadd.f32 %v237, %v241
    %v243 = vmax.f32 %v242, 0.0
    %v244 = vld [vmem:[%s3] sm:$0xff]
    %v245 = vld [vmem:[%s3 + $0x8] sm:$0xff]
    %v246 = vld [vmem:[%s4] sm:$0xff]
    %v247 = vld [vmem:[%s4 + $0x8] sm:$0xff]
    %v248 = vld [vmem:[%s4 + $0x10] sm:$0xff]
    %v249 = vld [vmem:[%s4 + $0x18] sm:$0xff]
    %v250 = vld [vmem:[%s4 + $0x20] sm:$0xff]
    %v251 = vld [vmem:[%s4 + $0x28] sm:$0xff]
    %v252 = vld [vmem:[%s4 + $0x30] sm:$0xff]
    %v253 = vld [vmem:[%s4 + $0x38] sm:$0xff]
    %v254 = vld [vmem:[%s4 + $0x40] sm:$0xff]
    %v255 = vld [vmem:[%s4 + $0x48] sm:$0xff]
    %v256 = vld [vmem:[%s4 + $0x50] sm:$0xff]
    %v257 = vld [vmem:[%s4 + $0x58] sm:$0xff]
    %v258 = vld [vmem:[%s4 + $0x60] sm:$0xff]
    %v259 = vld [vmem:[%s4 + $0x68] sm:$0xff]
    %v260 = vld [vmem:[%s4 + $0x70] sm:$0xff]
    %v261 = vld [vmem:[%s4 + $0x78] sm:$0xff]
    %262 = vmatprep.subr.mxu0 0.0
    %263 = vmatpush1.msra.mxu0 %v246
    %264 = vmatprep.subr.mxu0 0.0
    %265 = vmatpush1.msra.mxu0 %v247
    %266 = vmatprep.subr.mxu0 0.0
    %267 = vmatpush1.msra.mxu0 %v248
    %268 = vmatprep.subr.mxu0 0.0
    %269 = vmatpush1.msra.mxu0 %v249
    %270 = vmatprep.subr.mxu0 0.0
    %271 = vmatpush1.msra.mxu0 %v250
    %272 = vmatprep.subr.mxu0 0.0
    %273 = vmatpush1.msra.mxu0 %v251
    %274 = vmatprep.subr.mxu0 0.0
    %275 = vmatpush1.msra.mxu0 %v252
    %276 = vmatprep.subr.mxu0 0.0
    %277 = vmatpush1.msra.mxu0 %v253
    %278 = vmatprep.subr.mxu0 0.0
    %279 = vmatpush1.msra.mxu0 %v254
    %280 = vmatprep.subr.mxu0 0.0
    %281 = vmatpush1.msra.mxu0 %v255
    %282 = vmatprep.subr.mxu0 0.0
    %283 = vmatpush1.msra.mxu0 %v256
    %284 = vmatprep.subr.mxu0 0.0
    %285 = vmatpush1.msra.mxu0 %v257
    %286 = vmatprep.subr.mxu0 0.0
    %287 = vmatpush1.msra.mxu0 %v258
    %288 = vmatprep.subr.mxu0 0.0
    %289 = vmatpush1.msra.mxu0 %v259
    %290 = vmatprep.subr.mxu0 0.0
    %291 = vmatpush1.msra.mxu0 %v260
    %292 = vmatprep.subr.mxu0 0.0
    %293 = vmatpush1.msra.mxu0 %v261
    %294 = vmatprep.subr.mxu0 0.0
    %295 = vmatpush1.msra.mxu0 0.0
    %296 = vmatprep.subr.mxu0 0.0
    %297 = vmatpush1.msra.mxu0 0.0
    %298 = vmatprep.subr.mxu0 0.0
    %299 = vmatpush1.msra.mxu0 0.0
    %300 = vmatprep.subr.mxu0 0.0
    %301 = vmatpush1.msra.mxu0 0.0
    %302 = vmatprep.subr.mxu0 0.0
    %303 = vmatpush1.msra.mxu0 0.0
    %304 = vmatprep.subr.mxu0 0.0
    %305 = vmatpush1.msra.mxu0 0.0
    %306 = vmatprep.subr.mxu0 0.0
    %307 = vmatpush1.msra.mxu0 0.0
    %308 = vmatprep.subr.mxu0 0.0
    %309 = vmatpush1.msra.mxu0 0.0
    %310 = vmatprep.subr.mxu0 0.0
    %311 = vmatpush1.msra.mxu0 0.0
    %312 = vmatprep.subr.mxu0 0.0
    %313 = vmatpush1.msra.mxu0 0.0
    %314 = vmatprep.subr.mxu0 0.0
    %315 = vmatpush1.msra.mxu0 0.0
    %316 = vmatprep.subr.mxu0 0.0
    %317 = vmatpush1.msra.mxu0 0.0
    %318 = vmatprep.subr.mxu0 0.0
    %319 = vmatpush1.msra.mxu0 0.0
    %320 = vmatprep.subr.mxu0 0.0
    %321 = vmatpush1.msra.mxu0 0.0
    %322 = vmatprep.subr.mxu0 0.0
    %323 = vmatpush1.msra.mxu0 0.0
    %324 = vmatprep.subr.mxu0 0.0
    %325 = vmatpush1.msra.mxu0 0.0
    %326 = vmatprep.mubr.f32.mxu0 0.0
    %327 = vmatmul.mubr.f32.gmra.mrb[0].mxu0 %v28
    %v328 = vpop.f32.mrb[0].mxu0
    %v329 = vadd.f32 0.0, %v328
    %v330 = vpop.f32.mrb[0].mxu0
    %331 = vdwg.mxu0
    %v333 = vsel %vm218, %v243, 0
    %335 = vmatprep.subr.mxu0 0.0
    %336 = vmatpush1.msra.mxu0 %v244
    %337 = vmatprep.subr.mxu0 0.0
    %338 = vmatpush1.msra.mxu0 %v245
    %339 = vmatprep.subr.mxu0 0.0
    %340 = vmatpush1.msra.mxu0 0.0
    %341 = vmatprep.subr.mxu0 0.0
    %342 = vmatpush1.msra.mxu0 0.0
    %343 = vmatprep.subr.mxu0 0.0
    %344 = vmatpush1.msra.mxu0 0.0
    %345 = vmatprep.subr.mxu0 0.0
    %346 = vmatpush1.msra.mxu0 0.0
    %347 = vmatprep.subr.mxu0 0.0
    %348 = vmatpush1.msra.mxu0 0.0
    %349 = vmatprep.subr.mxu0 0.0
    %350 = vmatpush1.msra.mxu0 0.0
    %351 = vmatprep.subr.mxu0 0.0
    %352 = vmatpush1.msra.mxu0 0.0
    %353 = vmatprep.subr.mxu0 0.0
    %354 = vmatpush1.msra.mxu0 0.0
    %355 = vmatprep.subr.mxu0 0.0
    %356 = vmatpush1.msra.mxu0 0.0
    %357 = vmatprep.subr.mxu0 0.0
    %358 = vmatpush1.msra.mxu0 0.0
    %359 = vmatprep.subr.mxu0 0.0
    %360 = vmatpush1.msra.mxu0 0.0
    %361 = vmatprep.subr.mxu0 0.0
    %362 = vmatpush1.msra.mxu0 0.0
    %363 = vmatprep.subr.mxu0 0.0
    %364 = vmatpush1.msra.mxu0 0.0
    %365 = vmatprep.subr.mxu0 0.0
    %366 = vmatpush1.msra.mxu0 0.0
    %367 = vmatprep.subr.mxu0 0.0
    %368 = vmatpush1.msra.mxu0 0.0
    %369 = vmatprep.subr.mxu0 0.0
    %370 = vmatpush1.msra.mxu0 0.0
    %371 = vmatprep.subr.mxu0 0.0
    %372 = vmatpush1.msra.mxu0 0.0
    %373 = vmatprep.subr.mxu0 0.0
    %374 = vmatpush1.msra.mxu0 0.0
    %375 = vmatprep.subr.mxu0 0.0
    %376 = vmatpush1.msra.mxu0 0.0
    %377 = vmatprep.subr.mxu0 0.0
    %378 = vmatpush1.msra.mxu0 0.0
    %379 = vmatprep.subr.mxu0 0.0
    %380 = vmatpush1.msra.mxu0 0.0
    %381 = vmatprep.subr.mxu0 0.0
    %382 = vmatpush1.msra.mxu0 0.0
    %383 = vmatprep.subr.mxu0 0.0
    %384 = vmatpush1.msra.mxu0 0.0
    %385 = vmatprep.subr.mxu0 0.0
    %386 = vmatpush1.msra.mxu0 0.0
    %387 = vmatprep.subr.mxu0 0.0
    %388 = vmatpush1.msra.mxu0 0.0
    %389 = vmatprep.subr.mxu0 0.0
    %390 = vmatpush1.msra.mxu0 0.0
    %391 = vmatprep.subr.mxu0 0.0
    %392 = vmatpush1.msra.mxu0 0.0
    %393 = vmatprep.subr.mxu0 0.0
    %394 = vmatpush1.msra.mxu0 0.0
    %395 = vmatprep.subr.mxu0 0.0
    %396 = vmatpush1.msra.mxu0 0.0
    %397 = vmatprep.subr.mxu0 0.0
    %398 = vmatpush1.msra.mxu0 0.0
    %399 = vmatprep.mubr.f32.mxu0 0.0
    %400 = vmatmul.mubr.f32.gmra.mrb[0].mxu0 %v333
    %v401 = vpop.f32.mrb[0].mxu0
    %v402 = vadd.f32 %v329, %v401
    %v403 = vpop.f32.mrb[0].mxu0
    %404 = vdwg.mxu0
    %v405 = vlaneseq
    %v406 = vshrl.u32 %v405, 7
    %v407 = vsub.s32 4, %v406
    %v408 = vrot.slane %v27, %v407
    %v409 = vadd.f32 %v402, %v408
    %vm410 = vcmask 523264
    %v411 = vsel %vm410, %v409, 0.0
    %412 = vadd.xlane.f32.xlu0 %v411
    %v413 = vpop.xlane.xlu0 %412
    %v414 = vrcp.pop 64.0
    %v415 = vmul.f32 %v413, %v414
    %v416 = vsub.f32 %v409, %v415
    %v417 = vmul.f32 %v416, %v416
    %v418 = vsel %vm410, %v417, 0.0
    %419 = vadd.xlane.f32.xlu0 %v418
    %v420 = vpop.xlane.xlu0 %419
    %v421 = vmul.f32 %v420, %v414
    %v422 = vadd.f32 %v421, 1e-05
    %v423 = vrsqrt.pop %v422
    %v424 = vmul.f32 %v416, %v423
    %v425 = vlaneseq
    %v426 = vshrl.u32 %v425, 7
    %v427 = vsub.s32 5, %v426
    %v428 = vrot.slane %v27, %v427
    %v429 = vmul.f32 %v424, %v428
    %v430 = vlaneseq
    %v431 = vshrl.u32 %v430, 7
    %v432 = vsub.s32 6, %v431
    %v433 = vrot.slane %v27, %v432
    %v434 = vadd.f32 %v429, %v433
    %v435 = vmax.f32 %v434, 0.0
    %v436 = vld [vmem:[%s5] sm:$0xff]
    %v437 = vld [vmem:[%s5 + $0x8] sm:$0xff]
    %v438 = vld [vmem:[%s5 + $0x10] sm:$0xff]
    %v439 = vld [vmem:[%s5 + $0x18] sm:$0xff]
    %v440 = vld [vmem:[%s5 + $0x20] sm:$0xff]
    %v441 = vld [vmem:[%s5 + $0x28] sm:$0xff]
    %v442 = vld [vmem:[%s5 + $0x30] sm:$0xff]
    %v443 = vld [vmem:[%s5 + $0x38] sm:$0xff]
    %v444 = vlaneseq
    %v445 = vshrl.u32 %v444, 7
    %v446 = vsub.s32 7, %v445
    %v447 = vrot.slane %v27, %v446
    %v449 = vsel %vm410, %v435, 0
    %451 = vmatprep.subr.mxu0 0.0
    %452 = vmatpush1.msra.mxu0 %v436
    %453 = vmatprep.subr.mxu0 0.0
    %454 = vmatpush1.msra.mxu0 %v437
    %455 = vmatprep.subr.mxu0 0.0
    %456 = vmatpush1.msra.mxu0 %v438
    %457 = vmatprep.subr.mxu0 0.0
    %458 = vmatpush1.msra.mxu0 %v439
    %459 = vmatprep.subr.mxu0 0.0
    %460 = vmatpush1.msra.mxu0 %v440
    %461 = vmatprep.subr.mxu0 0.0
    %462 = vmatpush1.msra.mxu0 %v441
    %463 = vmatprep.subr.mxu0 0.0
    %464 = vmatpush1.msra.mxu0 %v442
    %465 = vmatprep.subr.mxu0 0.0
    %466 = vmatpush1.msra.mxu0 %v443
    %467 = vmatprep.subr.mxu0 0.0
    %468 = vmatpush1.msra.mxu0 0.0
    %469 = vmatprep.subr.mxu0 0.0
    %470 = vmatpush1.msra.mxu0 0.0
    %471 = vmatprep.subr.mxu0 0.0
    %472 = vmatpush1.msra.mxu0 0.0
    %473 = vmatprep.subr.mxu0 0.0
    %474 = vmatpush1.msra.mxu0 0.0
    %475 = vmatprep.subr.mxu0 0.0
    %476 = vmatpush1.msra.mxu0 0.0
    %477 = vmatprep.subr.mxu0 0.0
    %478 = vmatpush1.msra.mxu0 0.0
    %479 = vmatprep.subr.mxu0 0.0
    %480 = vmatpush1.msra.mxu0 0.0
    %481 = vmatprep.subr.mxu0 0.0
    %482 = vmatpush1.msra.mxu0 0.0
    %483 = vmatprep.subr.mxu0 0.0
    %484 = vmatpush1.msra.mxu0 0.0
    %485 = vmatprep.subr.mxu0 0.0
    %486 = vmatpush1.msra.mxu0 0.0
    %487 = vmatprep.subr.mxu0 0.0
    %488 = vmatpush1.msra.mxu0 0.0
    %489 = vmatprep.subr.mxu0 0.0
    %490 = vmatpush1.msra.mxu0 0.0
    %491 = vmatprep.subr.mxu0 0.0
    %492 = vmatpush1.msra.mxu0 0.0
    %493 = vmatprep.subr.mxu0 0.0
    %494 = vmatpush1.msra.mxu0 0.0
    %495 = vmatprep.subr.mxu0 0.0
    %496 = vmatpush1.msra.mxu0 0.0
    %497 = vmatprep.subr.mxu0 0.0
    %498 = vmatpush1.msra.mxu0 0.0
    %499 = vmatprep.subr.mxu0 0.0
    %500 = vmatpush1.msra.mxu0 0.0
    %501 = vmatprep.subr.mxu0 0.0
    %502 = vmatpush1.msra.mxu0 0.0
    %503 = vmatprep.subr.mxu0 0.0
    %504 = vmatpush1.msra.mxu0 0.0
    %505 = vmatprep.subr.mxu0 0.0
    %506 = vmatpush1.msra.mxu0 0.0
    %507 = vmatprep.subr.mxu0 0.0
    %508 = vmatpush1.msra.mxu0 0.0
    %509 = vmatprep.subr.mxu0 0.0
    %510 = vmatpush1.msra.mxu0 0.0
    %511 = vmatprep.subr.mxu0 0.0
    %512 = vmatpush1.msra.mxu0 0.0
    %513 = vmatprep.subr.mxu0 0.0
    %514 = vmatpush1.msra.mxu0 0.0
    %515 = vmatprep.mubr.f32.mxu0 0.0
    %516 = vmatmul.mubr.f32.gmra.mrb[0].mxu0 %v449
    %v517 = vpop.f32.mrb[0].mxu0
    %v518 = vadd.f32 %v447, %v517
    %v519 = vpop.f32.mrb[0].mxu0
    %520 = vdwg.mxu0
    %521 = vst [vmem:[#allocation2] sm:$0xff] %v518
    // Predicated region
    $region30: #{tpu_custom_call.1} parent=1 // pred_check
      _
    $region31: #{tpu_custom_call.1} parent=1 // pred_check_branch
      %523 = sbr.rel (0) target = $region33
    $region32: #{tpu_custom_call.1} parent=1 // pred_region
      %s525 = ssub.s32 128, 128
      %526 = vsyncadd [#allocation3], %s525
      %s528 = sshll.u32 [#allocation2], 4
      %s529 = int_to_ptr.vmem [resolvable:$true] %s528
      %531 = dma.vmem_to_hbm [thread:$0]  %s529, 128, %s7, [#allocation3]
    $region33: #{tpu_custom_call.1} parent=1 // pred_fallthru
      _
    // Predicated region
    $region34: #{tpu_custom_call.1} parent=1 // pred_check
      _
    $region35: #{tpu_custom_call.1} parent=1 // pred_check_branch
      %533 = sbr.rel (0) target = $region37
    $region36: #{tpu_custom_call.1} parent=1 // pred_region
      %534 = dma.done [#allocation3], 128
    $region37: #{tpu_custom_call.1} parent=1 // pred_fallthru
      _
    %535 = vsyncpa [#allocation3], 1

</llo_original>
